<compile_context>
chip_gen: v5e
topology: v5e:2x2
jax: 0.10.0
libtpu: 0.0.40
codegen_flags: <defaults>
</compile_context>

<pallas_src>
import functools

import jax
import jax.numpy as jnp
from jax.experimental import pallas as pl
from jax.experimental.pallas import tpu as pltpu


def _round_up(x: int, m: int) -> int:
    return ((x + m - 1) // m) * m


def _vmem_budget_bytes() -> int:
    # v5e/v6e: 128 MiB physical VMEM; v7x: 64 MiB/TC. Keep ~30% headroom for the
    # compiler's own scratch / pipelining bookkeeping, cap at 96 MiB.
    try:
        cap = int(pltpu.get_tpu_info().vmem_capacity_bytes)
    except Exception:  # pragma: no cover - conservative (v7x-sized) fallback
        cap = 64 * 1024 * 1024
    return min(int(cap * 0.7), 96 * 1024 * 1024)


# ----------------------------- kernels ---------------------------------------


def _fc_kernel_single_k(x_ref, w_ref, b_ref, o_ref):
    # Whole-K strip per (i, j) block: one MXU pass; bias + ReLU fused in f32.
    y = jnp.dot(x_ref[...], w_ref[...], preferred_element_type=jnp.float32)
    y = y + b_ref[...]
    o_ref[...] = jnp.maximum(y, 0.0).astype(o_ref.dtype)


def _fc_kernel_multi_k_f32out(x_ref, w_ref, b_ref, o_ref):
    # Output dtype is f32 and the output block index is constant across k, so
    # o_ref is VMEM-resident over the reduction: accumulate straight into it.
    k = pl.program_id(2)

    @pl.when(k == 0)
    def _init():
        # Fold the bias into the accumulator init.
        o_ref[...] = jnp.broadcast_to(b_ref[...], o_ref.shape)

    o_ref[...] += jnp.dot(x_ref[...], w_ref[...], preferred_element_type=jnp.float32)

    @pl.when(k == pl.num_programs(2) - 1)
    def _epilogue():
        o_ref[...] = jnp.maximum(o_ref[...], 0.0)


def _fc_kernel_multi_k_scratch(x_ref, w_ref, b_ref, o_ref, acc_ref):
    # Non-f32 output: keep an f32 accumulator scratch, cast once at the end.
    k = pl.program_id(2)

    @pl.when(k == 0)
    def _init():
        acc_ref[...] = jnp.broadcast_to(b_ref[...], acc_ref.shape)

    acc_ref[...] += jnp.dot(x_ref[...], w_ref[...], preferred_element_type=jnp.float32)

    @pl.when(k == pl.num_programs(2) - 1)
    def _epilogue():
        o_ref[...] = jnp.maximum(acc_ref[...], 0.0).astype(o_ref.dtype)


# ----------------------------- wrappers ---------------------------------------


def prepare_fc_params(w, b, *, compute_dtype=jnp.bfloat16):
    """Pad + cast FC parameters once, outside the per-call hot path.

    w: (Fin, Fout), b: (Fout,). Returns (wp, bp, Fout) with
    wp: (Kp, Np) in compute_dtype, bp: (1, Np) in f32, Kp/Np multiples of 128.
    """
    Fin, Fout = w.shape
    Kp = _round_up(Fin, 128)
    Np = _round_up(Fout, 128)
    wp = jnp.pad(w.astype(compute_dtype), ((0, Kp - Fin), (0, Np - Fout)))
    bp = jnp.pad(b.astype(jnp.float32), (0, Np - Fout)).reshape(1, Np)
    return wp, bp, Fout


def _pick_divisor_tile(dim: int, candidates) -> int:
    for t in candidates:
        if t <= dim and dim % t == 0:
            return t
    return dim


@functools.partial(jax.jit, static_argnames=("fout",))
def fc_unit_forward(x, wp, bp, *, fout):
    """relu(x @ W + b) with W, b pre-padded/cast by prepare_fc_params.

    x: (B, Fin) float; wp: (Kp, Np) compute dtype; bp: (1, Np) f32.
    Returns (B, fout) in x.dtype. Dropout(0.1) is identity (eval mode).
    """
    B, Fin = x.shape
    Kp, Np = wp.shape
    out_dtype = x.dtype
    compute_dtype = wp.dtype
    csize = jnp.dtype(compute_dtype).itemsize
    osize = jnp.dtype(out_dtype).itemsize

    budget = _vmem_budget_bytes()

    # ---- tile selection (shapes are static Python ints at trace time) -------
    Mp = _round_up(B, 8)
    # NOTE: for tiny batches (tm < 128) MXU row utilization is poor and plain XLA
    # would win; we still run the kernel here for correctness/demonstration.
    tm = min(512, Mp)
    Mp = _round_up(Mp, tm)
    # On v7x (2 TCs/chip) prefer >=2 blocks along a parallel axis; with tm<=512
    # any batch >512 already gives multiple M blocks.
    tn = _pick_divisor_tile(Np, (512, 384, 256, 128))

    # Collapse K entirely if the whole double-buffered K strip fits the budget.
    strip_bytes = (2 * (tm * Kp + Kp * tn) * csize
                   + 2 * tm * tn * osize + 2 * tn * 4)
    if strip_bytes <= budget:
        tk = Kp
    else:
        tk = 128
        for cand in (4096, 2048, 1024, 512, 256, 128):
            if cand <= Kp and Kp % cand == 0:
                need = (2 * (tm * cand + cand * tn) * csize
                        + 2 * tm * tn * osize + tm * tn * 4 + 2 * tn * 4)
                if need <= budget:
                    tk = cand
                    break

    # ---- per-call input prep: cast + pad only x's edges ---------------------
    xp = jnp.pad(x.astype(compute_dtype), ((0, Mp - B), (0, Kp - Fin)))

    # ---- advisory cost estimate ---------------------------------------------
    cost = pl.CostEstimate(
        flops=2 * Mp * Np * Kp,
        transcendentals=0,
        bytes_accessed=(Mp * Kp * csize * (Np // tn)
                        + Kp * Np * csize * (Mp // tm)
                        + Mp * Np * osize),
    )

    if tk == Kp:
        # Single K pass: 2-D grid, no accumulator, no branches.
        out_padded = pl.pallas_call(
            _fc_kernel_single_k,
            out_shape=jax.ShapeDtypeStruct((Mp, Np), out_dtype),
            grid=(Mp // tm, Np // tn),
            in_specs=[
                pl.BlockSpec((tm, Kp), lambda i, j: (i, 0)),   # x strip
                pl.BlockSpec((Kp, tn), lambda i, j: (0, j)),   # W strip
                pl.BlockSpec((1, tn), lambda i, j: (0, j)),    # bias slice
            ],
            out_specs=pl.BlockSpec((tm, tn), lambda i, j: (i, j)),
            compiler_params=pltpu.CompilerParams(
                dimension_semantics=("parallel", "parallel"),
                vmem_limit_bytes=budget,
            ),
            cost_estimate=cost,
        )(xp, wp, bp)
    else:
        common = dict(
            out_shape=jax.ShapeDtypeStruct((Mp, Np), out_dtype),
            grid=(Mp // tm, Np // tn, Kp // tk),
            in_specs=[
                pl.BlockSpec((tm, tk), lambda i, j, k: (i, k)),  # x tile
                pl.BlockSpec((tk, tn), lambda i, j, k: (k, j)),  # W tile
                pl.BlockSpec((1, tn), lambda i, j, k: (0, j)),   # bias slice
            ],
            out_specs=pl.BlockSpec((tm, tn), lambda i, j, k: (i, j)),
            compiler_params=pltpu.CompilerParams(
                dimension_semantics=("parallel", "parallel", "arbitrary"),
                vmem_limit_bytes=budget,
            ),
            cost_estimate=cost,
        )
        if out_dtype == jnp.float32:
            # Accumulate directly into the resident f32 output block.
            out_padded = pl.pallas_call(_fc_kernel_multi_k_f32out, **common)(xp, wp, bp)
        else:
            out_padded = pl.pallas_call(
                _fc_kernel_multi_k_scratch,
                scratch_shapes=[pltpu.VMEM((tm, tn), jnp.float32)],
                **common,
            )(xp, wp, bp)

    # TODO(synk): nn.Dropout(0.1) is identity in eval mode; training-mode masking
    # would need pltpu.prng_seed / prng_random_bits inside the kernel.
    return out_padded[:B, :fout]


if __name__ == "__main__":
    # Small shapes consistent with one MLP layer: batch=8, in_features=32, num_features=32.
    B, Fin, Fout = 8, 32, 32

    key = jax.random.PRNGKey(0)
    kx, kw, kb = jax.random.split(key, 3)

    x = jax.random.normal(kx, (B, Fin), dtype=jnp.float32)
    # Deterministic PyTorch-Linear-like init (uniform bound 1/sqrt(Fin)).
    bound = 1.0 / jnp.sqrt(jnp.float32(Fin))
    w = jax.random.uniform(kw, (Fin, Fout), minval=-bound, maxval=bound, dtype=jnp.float32)
    b = jax.random.uniform(kb, (Fout,), minval=-bound, maxval=bound, dtype=jnp.float32)

    # Parameters padded + cast to bf16 once, outside the per-call hot path.
    wp, bp, fout = prepare_fc_params(w, b, compute_dtype=jnp.bfloat16)

    out = fc_unit_forward(x, wp, bp, fout=fout)
    out = jax.block_until_ready(out)

    # Plain-JAX f32 reference; bf16 operands -> loosened tolerances.
    ref = jnp.maximum(x @ w + b, 0.0)
    assert out.shape == (B, Fout)
    assert jnp.allclose(out, ref, atol=2e-2, rtol=2e-2), float(jnp.max(jnp.abs(out - ref)))

    print("KERNEL_OK")
</pallas_src>

<mosaic_0001>
module attributes {stable_mosaic.version = 11 : i64} {
  func.func @_fc_kernel_single_k(%arg0: i32, %arg1: i32, %arg2: memref<8x128xbf16, #tpu.memory_space<vmem>>, %arg3: memref<128x128xbf16, #tpu.memory_space<vmem>>, %arg4: memref<1x128xf32, #tpu.memory_space<vmem>>, %arg5: memref<8x128xf32, #tpu.memory_space<vmem>>) attributes {dimension_semantics = [#tpu.dimension_semantics<parallel>, #tpu.dimension_semantics<parallel>], iteration_bounds = array<i64: 1, 1>, scalar_prefetch = 0 : i64, scratch_operands = 0 : i64, tpu.core_type = #tpu.core_type<tc>, window_params = [{transform_indices = @transform_0, window_bounds = array<i64: 8, 128>}, {transform_indices = @transform_1, window_bounds = array<i64: 128, 128>}, {transform_indices = @transform_2, window_bounds = array<i64: 1, 128>}, {transform_indices = @transform_3, window_bounds = array<i64: 8, 128>}]} {
    %c0 = arith.constant 0 : index
    %c0_0 = arith.constant 0 : index
    %0 = vector.load %arg2[%c0, %c0_0] : memref<8x128xbf16, #tpu.memory_space<vmem>>, vector<8x128xbf16>
    %c0_1 = arith.constant 0 : index
    %c0_2 = arith.constant 0 : index
    %1 = vector.load %arg3[%c0_1, %c0_2] : memref<128x128xbf16, #tpu.memory_space<vmem>>, vector<128x128xbf16>
    %cst = arith.constant dense<0.000000e+00> : vector<8x128xf32>
    %2 = tpu.matmul %0, %1, %cst {dimension_numbers = #tpu.dot_dimension_numbers<[1], [0], [0], [1], [0, 0, 1, 1], [], []>} : vector<8x128xbf16>, vector<128x128xbf16>, vector<8x128xf32> -> vector<8x128xf32>
    %c0_3 = arith.constant 0 : index
    %c0_4 = arith.constant 0 : index
    %3 = vector.load %arg4[%c0_3, %c0_4] : memref<1x128xf32, #tpu.memory_space<vmem>>, vector<1x128xf32>
    %4 = vector.broadcast %3 : vector<1x128xf32> to vector<8x128xf32>
    %5 = arith.addf %2, %4 : vector<8x128xf32>
    %cst_5 = arith.constant 0.000000e+00 : f32
    %6 = vector.broadcast %cst_5 : f32 to vector<8x128xf32>
    %7 = arith.maximumf %5, %6 : vector<8x128xf32>
    %c0_6 = arith.constant 0 : index
    %c0_7 = arith.constant 0 : index
    %8 = vector.load %arg5[%c0_6, %c0_7] : memref<8x128xf32, #tpu.memory_space<vmem>>, vector<8x128xf32>
    tpu.vector_store %arg5[%c0_6, %c0_7], %7 {strides = array<i32>} : memref<8x128xf32, #tpu.memory_space<vmem>>, vector<8x128xf32>,
    return
  }
  func.func @transform_0(%arg0: i32, %arg1: i32) -> (i32, i32) {
    %c0_i32 = arith.constant 0 : i32
    %c0_i32_0 = arith.constant 0 : i32
    return %arg0, %c0_i32 : i32, i32
  }
  func.func @transform_1(%arg0: i32, %arg1: i32) -> (i32, i32) {
    %c0_i32 = arith.constant 0 : i32
    %c0_i32_0 = arith.constant 0 : i32
    return %c0_i32, %arg1 : i32, i32
  }
  func.func @transform_2(%arg0: i32, %arg1: i32) -> (i32, i32) {
    %c0_i32 = arith.constant 0 : i32
    %c0_i32_0 = arith.constant 0 : i32
    return %c0_i32, %arg1 : i32, i32
  }
  func.func @transform_3(%arg0: i32, %arg1: i32) -> (i32, i32) {
    %c0_i32 = arith.constant 0 : i32
    return %arg0, %arg1 : i32, i32
  }
}

</mosaic_0001>

<llo_original>
// kernel: fc_unit_forward.1
$region0: #{fc_unit_forward.1}
  #allocation0 [shape = 'u32[]', space=smem, size = 0x4, offset = 0x4, fixed_abs, tag = 'smem constant byte address 0x4 - core index']
  #allocation1 [shape = 'u32[72,128]{1,0:T(1,128)}', space=vmem, size = 0x9000, scoped, tag = 'internal scratch']
  %s0 = inlined_call_operand.vmem [shape: bf16[8,128], index: 0, kind: input, shape index: {}]
  %s1 = inlined_call_operand.hbm [shape: bf16[128,128], index: 1, kind: input, shape index: {}]
  %s2 = inlined_call_operand.vmem [shape: f32[1,128], index: 2, kind: input, shape index: {}]
  %s3 = inlined_call_operand.hbm [shape: f32[8,128], index: 3, kind: output, shape index: {}]
  %s4 = sld [smem:[#allocation0]]
  $region26: #{fc_unit_forward.1} parent=0
    _
  %s6 = ssub.s32 1, %s4
  %s7 = scalar_select 0, %s6, %s4
  $region1: #{fc_unit_forward.1} parent=0
    #allocation2 [shape = 'u8[32768]{0}', space=vmem, size = 0x8000, scoped, tag = 'input window, operand 1, single buffered']
    #allocation3 [shape = 's32[1]{0}', space=sflag, size = 0x4, scoped, tag = 'scoped memory for fc_unit_forward.1']
    #allocation4 [shape = 's32[1]{0}', space=sflag, size = 0x4, scoped, tag = 'scoped memory for fc_unit_forward.1']
    #allocation5 [shape = 'u8[4096]{0}', space=vmem, size = 0x1000, scoped, tag = 'output window, operand 0, single buffered']
    %8 = vsyncpa [#allocation3], 0
    %9 = vsyncpa [#allocation4], 0
    // Predicated region
    $region2: #{fc_unit_forward.1} parent=1 // pred_check
      _
    $region3: #{fc_unit_forward.1} parent=1 // pred_check_branch
      %11 = sbr.rel (0) target = $region5
    $region4: #{fc_unit_forward.1} parent=1 // pred_region
      _
    $region5: #{fc_unit_forward.1} parent=1 // pred_fallthru
      _
    // Predicated region
    $region6: #{fc_unit_forward.1} parent=1 // pred_check
      _
    $region7: #{fc_unit_forward.1} parent=1 // pred_check_branch
      %13 = sbr.rel (0) target = $region9
    $region8: #{fc_unit_forward.1} parent=1 // pred_region
      %15 = vsyncadd [#allocation3], 0
      %s16 = sshll.u32 %s1, 4
      %s17 = int_to_ptr.hbm [resolvable:$true] %s16
      %s18 = sshll.u32 [#allocation2], 4
      %s19 = int_to_ptr.vmem [resolvable:$true] %s18
      %24 = dma.hbm_to_vmem [thread:$0]  %s17, 1024, %s19, [#allocation3], 64, 64, 4
    $region9: #{fc_unit_forward.1} parent=1 // pred_fallthru
      _
    // Predicated region
    $region10: #{fc_unit_forward.1} parent=1 // pred_check
      _
    $region11: #{fc_unit_forward.1} parent=1 // pred_check_branch
      %26 = sbr.rel (0) target = $region13
    $region12: #{fc_unit_forward.1} parent=1 // pred_region
      _
    $region13: #{fc_unit_forward.1} parent=1 // pred_fallthru
      _
    // Predicated region
    $region14: #{fc_unit_forward.1} parent=1 // pred_check
      _
    $region15: #{fc_unit_forward.1} parent=1 // pred_check_branch
      %28 = sbr.rel (0) target = $region17
    $region16: #{fc_unit_forward.1} parent=1 // pred_region
      %30 = dma.done [#allocation3], 1024
    $region17: #{fc_unit_forward.1} parent=1 // pred_fallthru
      _
    %v31 = vld [vmem:[%s0] sm:$0xf]
    %v32 = vld [vmem:[#allocation2] sm:$0xf]
    %v33 = vld [vmem:[#allocation2 + $0x4] sm:$0xf]
    %v34 = vld [vmem:[#allocation2 + $0x8] sm:$0xf]
    %v35 = vld [vmem:[#allocation2 + $0xc] sm:$0xf]
    %v36 = vld [vmem:[#allocation2 + $0x10] sm:$0xf]
    %v37 = vld [vmem:[#allocation2 + $0x14] sm:$0xf]
    %v38 = vld [vmem:[#allocation2 + $0x18] sm:$0xf]
    %v39 = vld [vmem:[#allocation2 + $0x1c] sm:$0xf]
    %v40 = vld [vmem:[#allocation2 + $0x20] sm:$0xf]
    %v41 = vld [vmem:[#allocation2 + $0x24] sm:$0xf]
    %v42 = vld [vmem:[#allocation2 + $0x28] sm:$0xf]
    %v43 = vld [vmem:[#allocation2 + $0x2c] sm:$0xf]
    %v44 = vld [vmem:[#allocation2 + $0x30] sm:$0xf]
    %v45 = vld [vmem:[#allocation2 + $0x34] sm:$0xf]
    %v46 = vld [vmem:[#allocation2 + $0x38] sm:$0xf]
    %v47 = vld [vmem:[#allocation2 + $0x3c] sm:$0xf]
    %v48 = vld [vmem:[%s2] sm:$0x1]
    %v50 = vperm.slane %v48, 0
    %v68 = vunpack.c.l.b16 %v32
    %v69 = vunpack.c.l.b16 %v33
    %v70 = vunpack.c.l.b16 %v34
    %v71 = vunpack.c.l.b16 %v35
    %v72 = vunpack.c.l.b16 %v36
    %v73 = vunpack.c.l.b16 %v37
    %v74 = vunpack.c.l.b16 %v38
    %v75 = vunpack.c.l.b16 %v39
    %v76 = vunpack.c.l.b16 %v40
    %v77 = vunpack.c.l.b16 %v41
    %v78 = vunpack.c.l.b16 %v42
    %v79 = vunpack.c.l.b16 %v43
    %v80 = vunpack.c.l.b16 %v44
    %v81 = vunpack.c.l.b16 %v45
    %v82 = vunpack.c.l.b16 %v46
    %v83 = vunpack.c.l.b16 %v47
    %v84 = vpack.c.b16 %v69, %v68
    %v85 = vpack.c.b16 %v71, %v70
    %v86 = vpack.c.b16 %v73, %v72
    %v87 = vpack.c.b16 %v75, %v74
    %v88 = vpack.c.b16 %v77, %v76
    %v89 = vpack.c.b16 %v79, %v78
    %v90 = vpack.c.b16 %v81, %v80
    %v91 = vpack.c.b16 %v83, %v82
    %100 = vmatpush.bf16.msra.mxu0 %v91
    %101 = vmatpush.bf16.msra.mxu0 %v90
    %102 = vmatpush.bf16.msra.mxu0 %v89
    %103 = vmatpush.bf16.msra.mxu0 %v88
    %104 = vmatpush.bf16.msra.mxu0 %v87
    %105 = vmatpush.bf16.msra.mxu0 %v86
    %106 = vmatpush.bf16.msra.mxu0 %v85
    %107 = vmatpush.bf16.msra.mxu0 %v84
    %108 = vmatmul.bf16.gmra.mxu0 %v31
    %v109 = vpop.f32.mrf.mxu0
    %v110 = vadd.f32 %v50, %v109
    %v111 = vpop.f32.mrf.mxu0
    %112 = vdwg.mxu0
    %v113 = vmax.f32 %v110, 0.0
    %114 = vst [vmem:[#allocation5] sm:$0xff] %v113
    // Predicated region
    $region18: #{fc_unit_forward.1} parent=1 // pred_check
      _
    $region19: #{fc_unit_forward.1} parent=1 // pred_check_branch
      %116 = sbr.rel (0) target = $region21
    $region20: #{fc_unit_forward.1} parent=1 // pred_region
      %118 = vsyncadd [#allocation4], 0
      %s120 = sshll.u32 [#allocation5], 4
      %s121 = int_to_ptr.vmem [resolvable:$true] %s120
      %s122 = sshll.u32 %s3, 4
      %s123 = int_to_ptr.hbm [resolvable:$true] %s122
      %125 = dma.vmem_to_hbm [thread:$0]  %s121, 128, %s123, [#allocation4]
    $region21: #{fc_unit_forward.1} parent=1 // pred_fallthru
      _
    // Predicated region
    $region22: #{fc_unit_forward.1} parent=1 // pred_check
      _
    $region23: #{fc_unit_forward.1} parent=1 // pred_check_branch
      %127 = sbr.rel (0) target = $region25
    $region24: #{fc_unit_forward.1} parent=1 // pred_region
      %129 = dma.done [#allocation4], 128
    $region25: #{fc_unit_forward.1} parent=1 // pred_fallthru
      _
    %130 = vsyncpa [#allocation3], 1
    %131 = vsyncpa [#allocation4], 1

</llo_original>
